<compile_context>
chip_gen: v7x
topology: tpu7x:2x2x1
jax: 0.10.0
libtpu: 0.0.40
codegen_flags: <defaults>
</compile_context>

<pallas_src>
import math

import jax
import jax.numpy as jnp
import numpy as np
from jax.experimental import pallas as pl
from jax.experimental.pallas import tpu as pltpu


def positional_encoding(max_len: int, emb_dim: int) -> jnp.ndarray:
    """Matches TokenAndPositionalEmbeddingLayer.positional_encoding (numpy)."""
    pos = np.arange(max_len)[:, np.newaxis].astype(np.float64)
    i = np.arange(emb_dim)[np.newaxis, :].astype(np.float64)
    angle_rates = 1.0 / np.power(10000.0, 2.0 * (i // 2) / np.float32(emb_dim))
    angle_rads = pos * angle_rates
    angle_rads[:, 0::2] = np.sin(angle_rads[:, 0::2])
    angle_rads[:, 1::2] = np.cos(angle_rads[:, 1::2])
    return jnp.asarray(angle_rads, dtype=jnp.float32)  # (max_len, emb_dim)


def _vmem_capacity_bytes() -> int:
    """Generation-aware VMEM capacity query (conservative fallback = v7x 64 MiB)."""
    try:
        cap = getattr(pltpu.get_tpu_info(), "vmem_capacity_bytes", None)
        if cap:
            return int(cap)
    except Exception:
        pass
    return 64 * 1024 * 1024


def _round_up(x: int, m: int) -> int:
    return ((x + m - 1) // m) * m


def _pick_tile_t(T: int, C_in: int, E: int, budget_bytes: int) -> int:
    """Largest sequence tile (multiple of 8) whose double-buffered
    x/pos/out (+ grid-invariant weight/bias) footprint fits the budget."""
    best = 8
    for tile in (8, 16, 32, 64, 128, 256, 512, 1024, 2048, 4096):
        per_step = (tile * C_in + 2 * tile * E + C_in * E + E) * 4
        if 2 * per_step <= budget_bytes:
            best = tile
        else:
            break
    # Never use a tile bigger than the (8-aligned) sequence length.
    return min(best, _round_up(T, 8))


def _make_kernel(C_in: int, scale: np.float32, use_fma: bool):
    def kernel(x_ref, w_ref, b_ref, pos_ref, o_ref):
        # x_ref:   (tile_t, C_in)   token features for this (seq-tile, batch)
        # w_ref:   (C_in, E)        conv1d(k=1) weight^T (grid-invariant)
        # b_ref:   (1, E)           conv bias            (grid-invariant)
        # pos_ref: (tile_t, E)      positional encoding tile (reused across batch)
        # o_ref:   (tile_t, E)
        x = x_ref[...]
        w = w_ref[...]
        if use_fma:
            # K = C_in is tiny: a few VPU FMAs in otherwise-idle VALU slots beat
            # a lane-sparse f32 MXU pass for this memory-bound kernel.
            acc = x[:, 0:1] * w[0:1, :]
            for c in range(1, C_in):
                acc = acc + x[:, c : c + 1] * w[c : c + 1, :]
        else:
            acc = jnp.dot(x, w, preferred_element_type=jnp.float32)
        # Same op order as PyTorch: (x @ W^T + b) * sqrt(E) + pos
        o_ref[...] = ((acc + b_ref[...]) * scale + pos_ref[...]).astype(o_ref.dtype)

    return kernel


def token_and_positional_embedding(x, weight, bias, pos_enc, out_dtype=jnp.float32):
    """
    x:       (B, T, C_in) float32   (or (B, T) -> treated as (B, T, 1))
    weight:  (E, C_in, 1) float32   (PyTorch Conv1d weight layout)
    bias:    (E,)         float32
    pos_enc: (max_len, E) float32
    returns: (B, T, E)    out_dtype (default float32, matching the module)
    """
    if x.ndim == 2:
        x = x[..., None]
    B, T, C_in = x.shape
    E = weight.shape[0]
    max_len = pos_enc.shape[0]
    if T > max_len:
        raise ValueError(f"sequence length {T} exceeds max_len {max_len}")

    # Tiny (C_in*E / E element) layout prep only; no (T,E)-sized per-call temps.
    w_t = jnp.transpose(weight[:, :, 0], (1, 0))  # (C_in, E)
    b_2d = bias.reshape(1, E)                     # (1, E)
    scale = np.float32(np.sqrt(np.float32(E)))

    vmem_cap = _vmem_capacity_bytes()
    budget = int(vmem_cap * 0.70)      # double-buffered tile budget
    vmem_limit = int(vmem_cap * 0.75)  # raise the scoped-VMEM limit to match

    tile_t = _pick_tile_t(T, C_in, E, budget)
    num_t = pl.cdiv(T, tile_t)
    grid = (num_t, B)  # batch innermost -> pos block index constant across B steps

    use_fma = C_in <= 8
    kernel = _make_kernel(C_in, scale, use_fma)

    out = pl.pallas_call(
        kernel,
        out_shape=jax.ShapeDtypeStruct((B, T, E), out_dtype),
        grid_spec=pltpu.PrefetchScalarGridSpec(
            num_scalar_prefetch=0,
            grid=grid,
            in_specs=[
                # token features; batch dim squeezed out of the kernel ref
                pl.BlockSpec((pl.Squeezed(), tile_t, C_in), lambda t, b: (b, t, 0)),
                # grid-invariant weight (fetched once)
                pl.BlockSpec((C_in, E), lambda t, b: (0, 0)),
                # grid-invariant bias (fetched once)
                pl.BlockSpec((1, E), lambda t, b: (0, 0)),
                # positional tile: depends only on t, so Pallas skips the
                # re-DMA across the inner batch steps
                pl.BlockSpec((tile_t, E), lambda t, b: (t, 0)),
            ],
            out_specs=pl.BlockSpec(
                (pl.Squeezed(), tile_t, E), lambda t, b: (b, t, 0)
            ),
        ),
        compiler_params=pltpu.CompilerParams(
            # seq axis "parallel" (megacore shards it); batch axis "arbitrary"
            # so it stays the innermost sequential loop on each core and the
            # positional-tile reuse is preserved.
            dimension_semantics=("parallel", "arbitrary"),
            vmem_limit_bytes=vmem_limit,
        ),
    )(x, w_t, b_2d, pos_enc)
    return out


def reference(x, weight, bias, pos_enc):
    """Pure-JAX reference of the PyTorch forward (high-precision matmul)."""
    if x.ndim == 2:
        x = x[..., None]
    E = weight.shape[0]
    w_t = jnp.transpose(weight[:, :, 0], (1, 0))
    y = (
        jnp.einsum("btc,ce->bte", x, w_t, precision=jax.lax.Precision.HIGHEST)
        + bias[None, None, :]
    )
    y = y * jnp.float32(math.sqrt(float(E)))
    return y + pos_enc[None, : x.shape[1]]


if __name__ == "__main__":
    # Small, module-consistent shapes.
    B, T, INPUT_DIM, EMB_DIM, MAX_LEN = 2, 8, 4, 32, 16

    key = jax.random.PRNGKey(0)
    k_x, k_w, k_b = jax.random.split(key, 3)

    x = jax.random.normal(k_x, (B, T, INPUT_DIM), dtype=jnp.float32)
    # Deterministic synthetic Conv1d(input_dim, emb_dim, 1) params.
    fan_in = INPUT_DIM * 1
    bound = 1.0 / math.sqrt(fan_in)
    weight = jax.random.uniform(
        k_w, (EMB_DIM, INPUT_DIM, 1), minval=-bound, maxval=bound, dtype=jnp.float32
    )
    bias = jax.random.uniform(
        k_b, (EMB_DIM,), minval=-bound, maxval=bound, dtype=jnp.float32
    )
    pos_enc = positional_encoding(MAX_LEN, EMB_DIM)

    out = token_and_positional_embedding(x, weight, bias, pos_enc)
    out = jax.block_until_ready(out)

    ref = reference(x, weight, bias, pos_enc)
    np.testing.assert_allclose(np.asarray(out), np.asarray(ref), rtol=1e-5, atol=1e-5)

    print("KERNEL_OK")
</pallas_src>

<mosaic_0001>
module attributes {stable_mosaic.version = 11 : i64} {
  func.func @kernel(%arg0: i32, %arg1: i32, %arg2: memref<1x8x4xf32, #tpu.memory_space<vmem>>, %arg3: memref<4x32xf32, #tpu.memory_space<vmem>>, %arg4: memref<1x32xf32, #tpu.memory_space<vmem>>, %arg5: memref<8x32xf32, #tpu.memory_space<vmem>>, %arg6: memref<1x8x32xf32, #tpu.memory_space<vmem>>) attributes {dimension_semantics = [#tpu.dimension_semantics<parallel>, #tpu.dimension_semantics<arbitrary>], iteration_bounds = array<i64: 1, 2>, scalar_prefetch = 0 : i64, scratch_operands = 0 : i64, tpu.core_type = #tpu.core_type<tc>, window_params = [{transform_indices = @transform_0, window_bounds = array<i64: 1, 8, 4>}, {pipeline_mode = #tpu.pipeline_mode<synchronous>, transform_indices = @transform_1, window_bounds = array<i64: 4, 32>}, {pipeline_mode = #tpu.pipeline_mode<synchronous>, transform_indices = @transform_2, window_bounds = array<i64: 1, 32>}, {transform_indices = @transform_3, window_bounds = array<i64: 8, 32>}, {transform_indices = @transform_4, window_bounds = array<i64: 1, 8, 32>}]} {
    %c0 = arith.constant 0 : index
    %c0_0 = arith.constant 0 : index
    %c0_1 = arith.constant 0 : index
    %0 = vector.load %arg2[%c0, %c0_0, %c0_1] : memref<1x8x4xf32, #tpu.memory_space<vmem>>, vector<1x8x4xf32>
    %1 = vector.shape_cast %0 : vector<1x8x4xf32> to vector<8x4xf32>
    %c0_2 = arith.constant 0 : index
    %c0_3 = arith.constant 0 : index
    %2 = vector.load %arg3[%c0_2, %c0_3] : memref<4x32xf32, #tpu.memory_space<vmem>>, vector<4x32xf32>
    %3 = vector.extract_strided_slice %1 {offsets = [0, 0], sizes = [8, 1], strides = [1, 1]} : vector<8x4xf32> to vector<8x1xf32>
    %4 = vector.extract_strided_slice %2 {offsets = [0, 0], sizes = [1, 32], strides = [1, 1]} : vector<4x32xf32> to vector<1x32xf32>
    %5 = vector.broadcast %3 : vector<8x1xf32> to vector<8x32xf32>
    %6 = vector.broadcast %4 : vector<1x32xf32> to vector<8x32xf32>
    %7 = arith.mulf %5, %6 : vector<8x32xf32>
    %8 = vector.extract_strided_slice %1 {offsets = [0, 1], sizes = [8, 1], strides = [1, 1]} : vector<8x4xf32> to vector<8x1xf32>
    %9 = vector.extract_strided_slice %2 {offsets = [1, 0], sizes = [1, 32], strides = [1, 1]} : vector<4x32xf32> to vector<1x32xf32>
    %10 = vector.broadcast %8 : vector<8x1xf32> to vector<8x32xf32>
    %11 = vector.broadcast %9 : vector<1x32xf32> to vector<8x32xf32>
    %12 = arith.mulf %10, %11 : vector<8x32xf32>
    %13 = arith.addf %7, %12 : vector<8x32xf32>
    %14 = vector.extract_strided_slice %1 {offsets = [0, 2], sizes = [8, 1], strides = [1, 1]} : vector<8x4xf32> to vector<8x1xf32>
    %15 = vector.extract_strided_slice %2 {offsets = [2, 0], sizes = [1, 32], strides = [1, 1]} : vector<4x32xf32> to vector<1x32xf32>
    %16 = vector.broadcast %14 : vector<8x1xf32> to vector<8x32xf32>
    %17 = vector.broadcast %15 : vector<1x32xf32> to vector<8x32xf32>
    %18 = arith.mulf %16, %17 : vector<8x32xf32>
    %19 = arith.addf %13, %18 : vector<8x32xf32>
    %20 = vector.extract_strided_slice %1 {offsets = [0, 3], sizes = [8, 1], strides = [1, 1]} : vector<8x4xf32> to vector<8x1xf32>
    %21 = vector.extract_strided_slice %2 {offsets = [3, 0], sizes = [1, 32], strides = [1, 1]} : vector<4x32xf32> to vector<1x32xf32>
    %22 = vector.broadcast %20 : vector<8x1xf32> to vector<8x32xf32>
    %23 = vector.broadcast %21 : vector<1x32xf32> to vector<8x32xf32>
    %24 = arith.mulf %22, %23 : vector<8x32xf32>
    %25 = arith.addf %19, %24 : vector<8x32xf32>
    %c0_4 = arith.constant 0 : index
    %c0_5 = arith.constant 0 : index
    %26 = vector.load %arg4[%c0_4, %c0_5] : memref<1x32xf32, #tpu.memory_space<vmem>>, vector<1x32xf32>
    %27 = vector.broadcast %26 : vector<1x32xf32> to vector<8x32xf32>
    %28 = arith.addf %25, %27 : vector<8x32xf32>
    %cst = arith.constant 5.65685415 : f32
    %29 = vector.broadcast %cst : f32 to vector<8x32xf32>
    %30 = arith.mulf %28, %29 : vector<8x32xf32>
    %c0_6 = arith.constant 0 : index
    %c0_7 = arith.constant 0 : index
    %31 = vector.load %arg5[%c0_6, %c0_7] : memref<8x32xf32, #tpu.memory_space<vmem>>, vector<8x32xf32>
    %32 = arith.addf %30, %31 : vector<8x32xf32>
    %c0_8 = arith.constant 0 : index
    %c0_9 = arith.constant 0 : index
    %c0_10 = arith.constant 0 : index
    %33 = vector.load %arg6[%c0_8, %c0_9, %c0_10] : memref<1x8x32xf32, #tpu.memory_space<vmem>>, vector<1x8x32xf32>
    %34 = vector.shape_cast %33 : vector<1x8x32xf32> to vector<8x32xf32>
    %35 = vector.shape_cast %32 : vector<8x32xf32> to vector<1x8x32xf32>
    tpu.vector_store %arg6[%c0_8, %c0_9, %c0_10], %35 {strides = array<i32>} : memref<1x8x32xf32, #tpu.memory_space<vmem>>, vector<1x8x32xf32>,
    return
  }
  func.func @transform_0(%arg0: i32, %arg1: i32) -> (i32, i32, i32) {
    %c0_i32 = arith.constant 0 : i32
    %c0_i32_0 = arith.constant 0 : i32
    return %arg1, %arg0, %c0_i32 : i32, i32, i32
  }
  func.func @transform_1(%arg0: i32, %arg1: i32) -> (i32, i32) {
    %c0_i32 = arith.constant 0 : i32
    %c0_i32_0 = arith.constant 0 : i32
    %c0_i32_1 = arith.constant 0 : i32
    return %c0_i32, %c0_i32_0 : i32, i32
  }
  func.func @transform_2(%arg0: i32, %arg1: i32) -> (i32, i32) {
    %c0_i32 = arith.constant 0 : i32
    %c0_i32_0 = arith.constant 0 : i32
    %c0_i32_1 = arith.constant 0 : i32
    return %c0_i32, %c0_i32_0 : i32, i32
  }
  func.func @transform_3(%arg0: i32, %arg1: i32) -> (i32, i32) {
    %c0_i32 = arith.constant 0 : i32
    %c0_i32_0 = arith.constant 0 : i32
    return %arg0, %c0_i32 : i32, i32
  }
  func.func @transform_4(%arg0: i32, %arg1: i32) -> (i32, i32, i32) {
    %c0_i32 = arith.constant 0 : i32
    %c0_i32_0 = arith.constant 0 : i32
    return %arg1, %arg0, %c0_i32 : i32, i32, i32
  }
}

</mosaic_0001>

<llo_original>
// kernel: tpu_custom_call.1
$region0: #{tpu_custom_call.1}
  #allocation0 [shape = 'u32[]', space=smem, size = 0x4, offset = 0x4, fixed_abs, tag = 'smem constant byte address 0x4 - core index']
  #allocation1 [shape = 'u32[144,128]{1,0:T(1,128)}', space=vmem, size = 0x12000, scoped, tag = 'internal scratch']
  %s0 = inlined_call_operand.vmem [shape: f32[2,8,4], index: 0, kind: input, shape index: {}]
  %s1 = inlined_call_operand.vmem [shape: f32[4,32], index: 1, kind: input, shape index: {}]
  %s2 = inlined_call_operand.vmem [shape: f32[1,32], index: 2, kind: input, shape index: {}]
  %s3 = inlined_call_operand.vmem [shape: f32[16,32], index: 3, kind: input, shape index: {}]
  %s4 = inlined_call_operand.hbm [shape: f32[2,8,32], index: 4, kind: output, shape index: {}]
  %s5 = sld [smem:[#allocation0]]
  $region49: #{tpu_custom_call.1} parent=0
    _
  %s7 = ssub.s32 1, %s5
  %s8 = scalar_select 0, %s7, %s5
  $region1: #{tpu_custom_call.1} parent=0
    #allocation2 [shape = 'u8[8192]{0}', space=vmem, size = 0x2000, scoped, tag = 'output window, operand 0']
    #allocation3 [shape = 's32[2]{0}', space=sflag, size = 0x8, scoped, tag = 'scoped memory for tpu_custom_call.1']
    %9 = vsyncpa [#allocation3], 0
    %s10 = scalar_lea.sflag [#allocation3], 1
    %11 = vsyncpa %s10, 0
    loop: start=0, step=1, limit=4
    $region2: #{tpu_custom_call.1} parent=1 // loop_pre_header
      _
    $region3: #{tpu_custom_call.1} parent=1 // loop_header
      %s13 = sphi 0, %s17
      %p14 = scmp.ge.s32.totalorder %s13, 4
      %s20 = sphi 0, %s32
      %s21 = sphi 0, %s28
      %s22 = sphi 0, %s20
      %s23 = sphi 0, %s21
      %s24 = sphi 0, %s22
      %s25 = sphi 0, %s23
      %s37 = sphi 0, %s39
      %s40 = sphi 0, %s37
      %s41 = sphi 0, %s40
      %s57 = sphi 0, %s41
      %s61 = sphi 0, %s61
      %s63 = sphi 0, %s61
      %s64 = sphi 0, %s63
      %s78 = sphi 0, %s64
      %s82 = sphi 0, %s82
      %s84 = sphi 0, %s82
      %s85 = sphi 0, %s84
      %s99 = sphi 0, %s85
      %s105 = sphi 0, %s107
      %s108 = sphi 0, %s105
      %s109 = sphi 0, %s108
      %s125 = sphi 0, %s109
      %s133 = sphi 0, %s135
      %s136 = sphi 0, %s133
      %s137 = sphi 0, %s136
      %s153 = sphi 0, %s137
    $region4: #{tpu_custom_call.1} parent=1 // loop_header_branch
      %16 = sbr.rel (%p14) target = $region8
    $region5: #{tpu_custom_call.1} parent=1 // loop_body
      %s18 = ssub.s32 %s13, 1
      %s19 = ssub.s32 %s13, 2
      %s26 = sadd.s32 1, %s21
      %p27 = scmp.ge.s32.totalorder %s26, 2
      %s28 = scalar_select %p27, 0, %s26
      %s29 = sadd.s32 1, %s20
      %s30 = scalar_select %p27, %s29, %s20
      %p31 = scmp.ge.s32.totalorder %s30, 1
      %s32 = scalar_select %p31, 0, %s30
      %s33 = ssub.s32 %s21, %s28
      %s34 = ssub.s32 %s20, %s32
      %s35 = sor.u32 %s33, %s34
      %p36 = scmp.eq.s32.totalorder %s35, 0
      %s38 = sadd.s32 %s37, 1
      %s39 = scalar_select %p36, %s37, %s38
      %p42 = pneg %p36
      %p43 = scmp.eq.s32.totalorder %s13, 1
      %p44 = por %p42, %p43
      %p45 = scmp.ne.s32.totalorder %s37, %s40
      %p46 = scmp.eq.s32.totalorder %s13, 0
      %p47 = por %p45, %p46
      %p48 = scmp.ne.s32.totalorder %s37, %s40
      %p49 = scmp.eq.s32.totalorder %s18, 1
      %p50 = por %p48, %p49
      %p51 = scmp.ne.s32.totalorder %s40, %s41
      %p52 = scmp.eq.s32.totalorder %s18, 0
      %p53 = por %p51, %p52
      %p54 = scmp.ne.s32.totalorder %s40, %s41
      %p55 = scmp.eq.s32.totalorder %s19, 1
      %p56 = por %p54, %p55
      %p58 = scmp.ne.s32.totalorder %s41, %s57
      %p59 = scmp.eq.s32.totalorder %s19, 0
      %p60 = por %p58, %p59
      %s62 = sadd.s32 %s61, 1
      %p65 = scmp.eq.s32.totalorder %s13, 1
      %p66 = scmp.ne.s32.totalorder %s61, %s63
      %p67 = scmp.eq.s32.totalorder %s13, 0
      %p68 = por %p66, %p67
      %p69 = scmp.ne.s32.totalorder %s61, %s63
      %p70 = scmp.eq.s32.totalorder %s18, 1
      %p71 = por %p69, %p70
      %p72 = scmp.ne.s32.totalorder %s63, %s64
      %p73 = scmp.eq.s32.totalorder %s18, 0
      %p74 = por %p72, %p73
      %p75 = scmp.ne.s32.totalorder %s63, %s64
      %p76 = scmp.eq.s32.totalorder %s19, 1
      %p77 = por %p75, %p76
      %p79 = scmp.ne.s32.totalorder %s64, %s78
      %p80 = scmp.eq.s32.totalorder %s19, 0
      %p81 = por %p79, %p80
      %s83 = sadd.s32 %s82, 1
      %p86 = scmp.eq.s32.totalorder %s13, 1
      %p87 = scmp.ne.s32.totalorder %s82, %s84
      %p88 = scmp.eq.s32.totalorder %s13, 0
      %p89 = por %p87, %p88
      %p90 = scmp.ne.s32.totalorder %s82, %s84
      %p91 = scmp.eq.s32.totalorder %s18, 1
      %p92 = por %p90, %p91
      %p93 = scmp.ne.s32.totalorder %s84, %s85
      %p94 = scmp.eq.s32.totalorder %s18, 0
      %p95 = por %p93, %p94
      %p96 = scmp.ne.s32.totalorder %s84, %s85
      %p97 = scmp.eq.s32.totalorder %s19, 1
      %p98 = por %p96, %p97
      %p100 = scmp.ne.s32.totalorder %s85, %s99
      %p101 = scmp.eq.s32.totalorder %s19, 0
      %p102 = por %p100, %p101
      %s103 = ssub.s32 %s20, %s32
      %p104 = scmp.eq.s32.totalorder %s103, 0
      %s106 = sadd.s32 %s105, 1
      %s107 = scalar_select %p104, %s105, %s106
      %p110 = pneg %p104
      %p111 = scmp.eq.s32.totalorder %s13, 1
      %p112 = por %p110, %p111
      %p113 = scmp.ne.s32.totalorder %s105, %s108
      %p114 = scmp.eq.s32.totalorder %s13, 0
      %p115 = por %p113, %p114
      %p116 = scmp.ne.s32.totalorder %s105, %s108
      %p117 = scmp.eq.s32.totalorder %s18, 1
      %p118 = por %p116, %p117
      %p119 = scmp.ne.s32.totalorder %s108, %s109
      %p120 = scmp.eq.s32.totalorder %s18, 0
      %p121 = por %p119, %p120
      %p122 = scmp.ne.s32.totalorder %s108, %s109
      %p123 = scmp.eq.s32.totalorder %s19, 1
      %p124 = por %p122, %p123
      %p126 = scmp.ne.s32.totalorder %s109, %s125
      %p127 = scmp.eq.s32.totalorder %s19, 0
      %p128 = por %p126, %p127
      %s129 = ssub.s32 %s21, %s28
      %s130 = ssub.s32 %s20, %s32
      %s131 = sor.u32 %s129, %s130
      %p132 = scmp.eq.s32.totalorder %s131, 0
      %s134 = sadd.s32 %s133, 1
      %s135 = scalar_select %p132, %s133, %s134
      %p138 = pneg %p132
      %p139 = scmp.eq.s32.totalorder %s13, 1
      %p140 = por %p138, %p139
      %p141 = scmp.ne.s32.totalorder %s133, %s136
      %p142 = scmp.eq.s32.totalorder %s13, 0
      %p143 = por %p141, %p142
      %p144 = scmp.ne.s32.totalorder %s133, %s136
      %p145 = scmp.eq.s32.totalorder %s18, 1
      %p146 = por %p144, %p145
      %p147 = scmp.ne.s32.totalorder %s136, %s137
      %p148 = scmp.eq.s32.totalorder %s18, 0
      %p149 = por %p147, %p148
      %p150 = scmp.ne.s32.totalorder %s136, %s137
      %p151 = scmp.eq.s32.totalorder %s19, 1
      %p152 = por %p150, %p151
      %p154 = scmp.ne.s32.totalorder %s137, %s153
      %p155 = scmp.eq.s32.totalorder %s19, 0
      %p156 = por %p154, %p155
      %p157 = scmp.le.s32.totalorder 1, %s13
      %p158 = scmp.lt.s32.totalorder %s13, 3
      %p159 = pnand %p157, %p158
      %p160 = pneg %p159
      // Predicated region
      $region9: #{tpu_custom_call.1} parent=5 // pred_check
        _
      $region10: #{tpu_custom_call.1} parent=5 // pred_check_branch
        %162 = sbr.rel (%p159) target = $region12
      $region11: #{tpu_custom_call.1} parent=5 // pred_region
        %s163 = ssub.s32 %s13, 1
        // Predicated region
        $region13: #{tpu_custom_call.1} parent=11 // pred_check
          %p164 = pneg %p74
        $region14: #{tpu_custom_call.1} parent=11 // pred_check_branch
          %166 = sbr.rel (%p164) target = $region16
        $region15: #{tpu_custom_call.1} parent=11 // pred_region
          _
        $region16: #{tpu_custom_call.1} parent=11 // pred_fallthru
          _
        // Predicated region
        $region17: #{tpu_custom_call.1} parent=11 // pred_check
          %p167 = pneg %p95
        $region18: #{tpu_custom_call.1} parent=11 // pred_check_branch
          %169 = sbr.rel (%p167) target = $region20
        $region19: #{tpu_custom_call.1} parent=11 // pred_region
          _
        $region20: #{tpu_custom_call.1} parent=11 // pred_fallthru
          _
        // Predicated region
        $region21: #{tpu_custom_call.1} parent=11 // pred_check
          %p170 = pneg %p121
        $region22: #{tpu_custom_call.1} parent=11 // pred_check_branch
          %172 = sbr.rel (%p170) target = $region24
        $region23: #{tpu_custom_call.1} parent=11 // pred_region
          %p173 = scmp.lt.s32.totalorder %s22, 1
          %s174 = scalar_select %p173, %s22, 1
          %s175 = smul.addr %s174, 8
          %s176 = scalar_lea.vmem %s3, %s175
        $region24: #{tpu_custom_call.1} parent=11 // pred_fallthru
          _
      $region12: #{tpu_custom_call.1} parent=5 // pred_fallthru
        _
      %p177 = scmp.lt.s32.totalorder %s13, 2
      // Predicated region
      $region25: #{tpu_custom_call.1} parent=5 // pred_check
        %p178 = pneg %p177
      $region26: #{tpu_custom_call.1} parent=5 // pred_check_branch
        %180 = sbr.rel (%p178) target = $region28
      $region27: #{tpu_custom_call.1} parent=5 // pred_region
        // Predicated region
        $region29: #{tpu_custom_call.1} parent=27 // pred_check
          %p181 = pneg %p47
        $region30: #{tpu_custom_call.1} parent=27 // pred_check_branch
          %183 = sbr.rel (%p181) target = $region32
        $region31: #{tpu_custom_call.1} parent=27 // pred_region
          %p184 = scmp.lt.s32.totalorder %s21, 1
          %s185 = scalar_select %p184, %s21, 1
          %p186 = scmp.lt.s32.totalorder %s20, 0
          %s187 = scalar_select %p186, %s20, 0
          %s188 = sadd.s32 %s187, %s185
          %s189 = smul.addr %s188, 8
          %s190 = scalar_lea.vmem %s0, %s189
        $region32: #{tpu_custom_call.1} parent=27 // pred_fallthru
          _
      $region28: #{tpu_custom_call.1} parent=5 // pred_fallthru
        _
      %p191 = scmp.le.s32.totalorder 1, %s13
      %p192 = scmp.lt.s32.totalorder %s13, 3
      %p193 = pnand %p191, %p192
      %p194 = pneg %p193
      // Predicated region
      $region33: #{tpu_custom_call.1} parent=5 // pred_check
        _
      $region34: #{tpu_custom_call.1} parent=5 // pred_check_branch
        %196 = sbr.rel (%p193) target = $region36
      $region35: #{tpu_custom_call.1} parent=5 // pred_region
        %s197 = ssub.s32 %s13, 1
        %p198 = scmp.lt.s32.totalorder %s23, 1
        %s199 = scalar_select %p198, %s23, 1
        %p200 = scmp.lt.s32.totalorder %s22, 0
        %s201 = scalar_select %p200, %s22, 0
        %s202 = sadd.s32 %s201, %s199
        %s203 = smul.addr %s202, 8
        %s204 = scalar_lea.vmem %s0, %s203
        %p205 = pneg %p53
        %p206 = pneg %p50
        %p207 = pneg %p74
        %p208 = pneg %p71
        %p209 = pneg %p95
        %p210 = pneg %p92
        %p211 = scmp.lt.s32.totalorder %s22, 1
        %s212 = scalar_select %p211, %s22, 1
        %s213 = smul.addr %s212, 8
        %s214 = scalar_lea.vmem %s3, %s213
        %p215 = pneg %p121
        %p216 = pneg %p118
        %p217 = pneg %p149
        %p218 = pneg %p146
        %s219 = sand.u32 %s136, 1
        %s220 = scalar_lea.sflag [#allocation3], %s219
        %s221 = sand.u32 %s136, 1
        %s222 = smul.addr %s221, 8
        %s223 = scalar_lea.vmem [#allocation2], %s222
        %p224 = scmp.lt.s32.totalorder %s23, 1
        %s225 = scalar_select %p224, %s23, 1
        %p226 = scmp.lt.s32.totalorder %s22, 0
        %s227 = scalar_select %p226, %s22, 0
        %s228 = sadd.s32 %s227, %s225
        %s229 = smul.addr %s228, 8
        %s230 = scalar_lea.vmem %s0, %s229
        %p231 = scmp.lt.s32.totalorder %s22, 1
        %s232 = scalar_select %p231, %s22, 1
        %s233 = smul.addr %s232, 8
        %s234 = scalar_lea.vmem %s3, %s233
        %v235 = vld [vmem:[%s230] sm:$0xff]
        %v236 = vld [vmem:[%s1] sm:$0xf]
        %238 = vset.pattern.permute.xlu0 0
        %239 = vperm.xlu0 %238, %v235
        %v240 = vpop.permute.xlu0 %239
        %v242 = vlaneseq
        %v243 = vshrl.u32 %v242, 7
        %v244 = vsub.s32 0, %v243
        %v245 = vrot.slane %v236, %v244
        %v246 = vmul.f32 %v240, %v245
        %247 = vset.pattern.permute.xlu0 1
        %248 = vperm.xlu0 %247, %v235
        %v249 = vpop.permute.xlu0 %248
        %v251 = vlaneseq
        %v252 = vshrl.u32 %v251, 7
        %v253 = vsub.s32 1, %v252
        %v254 = vrot.slane %v236, %v253
        %v255 = vmul.f32 %v249, %v254
        %v256 = vadd.f32 %v246, %v255
        %257 = vset.pattern.permute.xlu0 2
        %258 = vperm.xlu0 %257, %v235
        %v259 = vpop.permute.xlu0 %258
        %v261 = vlaneseq
        %v262 = vshrl.u32 %v261, 7
        %v263 = vsub.s32 2, %v262
        %v264 = vrot.slane %v236, %v263
        %v265 = vmul.f32 %v259, %v264
        %v266 = vadd.f32 %v256, %v265
        %267 = vset.pattern.permute.xlu0 3
        %268 = vperm.xlu0 %267, %v235
        %v269 = vpop.permute.xlu0 %268
        %v271 = vlaneseq
        %v272 = vshrl.u32 %v271, 7
        %v273 = vsub.s32 3, %v272
        %v274 = vrot.slane %v236, %v273
        %v275 = vmul.f32 %v269, %v274
        %v276 = vadd.f32 %v266, %v275
        %v277 = vld [vmem:[%s2] sm:$0x1]
        %v279 = vlaneseq
        %v280 = vshrl.u32 %v279, 7
        %v281 = vsub.s32 0, %v280
        %v282 = vrot.slane %v277, %v281
        %v284 = vadd.f32 %v276, %v282
        %v285 = vmul.f32 %v284, 5.656854
        %v286 = vld [vmem:[%s234] sm:$0xff]
        %v287 = vadd.f32 %v285, %v286
        %vm288 = vcmask 261120
        %289 = vst.msk [vmem:[%s223] sm:$0xff] %vm288, %v287
        %s290 = sand.u32 %s136, 1
        %s291 = scalar_lea.sflag [#allocation3], %s290
        %s292 = sand.u32 %s136, 1
        %s293 = smul.addr %s292, 8
        %s294 = scalar_lea.vmem [#allocation2], %s293
        // Predicated region
        $region37: #{tpu_custom_call.1} parent=35 // pred_check
          %p295 = pneg %p146
        $region38: #{tpu_custom_call.1} parent=35 // pred_check_branch
          %297 = sbr.rel (%p295) target = $region40
        $region39: #{tpu_custom_call.1} parent=35 // pred_region
          %s299 = ssub.s32 128, 128
          %300 = vsyncadd %s291, %s299
          %s301 = sadd.s32 %s22, %s23
          %s302 = smul.addr %s301, 128
          %s303 = scalar_lea.hbm %s4, %s302
          %s305 = sshll.u32 %s294, 4
          %s306 = int_to_ptr.vmem [resolvable:$true] %s305
          %308 = dma.vmem_to_hbm [thread:$0]  %s306, 128, %s303, %s291
        $region40: #{tpu_custom_call.1} parent=35 // pred_fallthru
          _
      $region36: #{tpu_custom_call.1} parent=5 // pred_fallthru
        _
      %p309 = scmp.le.s32.totalorder 2, %s13
      // Predicated region
      $region41: #{tpu_custom_call.1} parent=5 // pred_check
        %p310 = pneg %p309
      $region42: #{tpu_custom_call.1} parent=5 // pred_check_branch
        %312 = sbr.rel (%p310) target = $region44
      $region43: #{tpu_custom_call.1} parent=5 // pred_region
        %s313 = ssub.s32 %s13, 2
        // Predicated region
        $region45: #{tpu_custom_call.1} parent=43 // pred_check
          %p314 = pneg %p152
        $region46: #{tpu_custom_call.1} parent=43 // pred_check_branch
          %316 = sbr.rel (%p314) target = $region48
        $region47: #{tpu_custom_call.1} parent=43 // pred_region
          %s317 = sand.u32 %s137, 1
          %s318 = scalar_lea.sflag [#allocation3], %s317
          %s319 = sand.u32 %s137, 1
          %s320 = smul.addr %s319, 8
          %s321 = scalar_lea.vmem [#allocation2], %s320
          %322 = dma.done %s318, 128
        $region48: #{tpu_custom_call.1} parent=43 // pred_fallthru
          _
      $region44: #{tpu_custom_call.1} parent=5 // pred_fallthru
        _
    $region6: #{tpu_custom_call.1} parent=1 // loop_footer
      %s17 = sadd.s32 1, %s13
    $region7: #{tpu_custom_call.1} parent=1 // loop_footer_branch
      %12 = sbr.rel target = $region3
    $region8: #{tpu_custom_call.1} parent=1 // loop_exit
      _
    %323 = vsyncpa [#allocation3], 1
    %s324 = scalar_lea.sflag [#allocation3], 1
    %325 = vsyncpa %s324, 1

</llo_original>
